<compile_context>
chip_gen: v5e
topology: v5e:2x2
jax: 0.10.0
libtpu: 0.0.40
codegen_flags: <defaults>
</compile_context>

<pallas_src>
import functools

import jax
import jax.numpy as jnp
from jax import lax
from jax.experimental import pallas as pl
from jax.experimental.pallas import tpu as pltpu
import numpy as np


def _round_up(a: int, m: int) -> int:
    return (a + m - 1) // m * m


def _gelu_exact(x):
    # nn.GELU() default = exact erf formulation
    return 0.5 * x * (1.0 + lax.erf(x * 0.7071067811865476))


def _mlp_kernel(x_ref, w1_ref, b1_ref, g_ref, beta_ref, w2_ref, b2_ref, o_ref,
                *, normalize: bool, ln_eps: float, l2_eps: float,
                inv_hidden: float):
    # ---- Linear 1 (MXU): native-dtype operands, f32 accumulation ------------
    h = jnp.dot(x_ref[...], w1_ref[...], preferred_element_type=jnp.float32)
    h = h + b1_ref[...].astype(jnp.float32)
    h = _gelu_exact(h)                                    # f32, (rt, d_hid_p)

    # ---- LayerNorm over the *real* hidden width ------------------------------
    # Padded hidden columns are exactly zero (zero W1 cols + zero bias ->
    # GELU(0) = 0), so sums over the padded axis equal the sums over the real
    # axis; divide by the real d_hid.
    s1 = jnp.sum(h, axis=-1, keepdims=True)
    s2 = jnp.sum(h * h, axis=-1, keepdims=True)
    mu = s1 * inv_hidden
    var = s2 * inv_hidden - mu * mu
    hn = (h - mu) * lax.rsqrt(var + ln_eps)               # rsqrt -> EUP slot
    # gamma/beta are zero in padded columns -> padded columns return to 0.
    hn = hn * g_ref[...].astype(jnp.float32) + beta_ref[...].astype(jnp.float32)

    # ---- Linear 2 (MXU) -------------------------------------------------------
    hn = hn.astype(w2_ref.dtype)
    y = jnp.dot(hn, w2_ref[...], preferred_element_type=jnp.float32)
    y = y + b2_ref[...].astype(jnp.float32)
    y = _gelu_exact(y)

    if normalize:
        # F.normalize(p=2, eps=1e-12): x / max(||x||, eps)
        #   == x * rsqrt(max(sum(x^2), eps^2)).
        # Padded output columns are 0 and do not perturb the norm.
        ss = jnp.sum(y * y, axis=-1, keepdims=True)
        y = y * lax.rsqrt(jnp.maximum(ss, l2_eps * l2_eps))

    o_ref[...] = y.astype(o_ref.dtype)


def mlp_pallas(x, params, *, normalize=False, row_tile=256):
    """x: (..., input_dim). Returns (..., out_dim)."""
    w1, b1, gamma, beta, w2, b2 = params
    d_in, d_hid = w1.shape
    d_out = w2.shape[1]
    assert x.shape[-1] == d_in, f"Invalid input dim: expected {d_in}, found {x.shape[-1]}"

    lead = x.shape[:-1]
    rows = int(np.prod(lead)) if lead else 1
    x2 = x.reshape(rows, d_in)

    # --- lane-dense padding of feature dims (multiples of 128) ----------------
    d_hid_p = _round_up(d_hid, 128)
    d_out_p = _round_up(d_out, 128)
    if d_hid_p != d_hid:
        ph = d_hid_p - d_hid
        w1 = jnp.pad(w1, ((0, 0), (0, ph)))
        b1 = jnp.pad(b1, (0, ph))
        gamma = jnp.pad(gamma, (0, ph))      # zero gamma kills padded columns
        beta = jnp.pad(beta, (0, ph))
        w2 = jnp.pad(w2, ((0, ph), (0, 0)))
    if d_out_p != d_out:
        po = d_out_p - d_out
        w2 = jnp.pad(w2, ((0, 0), (0, po)))
        b2 = jnp.pad(b2, (0, po))

    # keep 1-D params 2-D for clean VMEM layout
    b1_2 = b1.reshape(1, d_hid_p)
    g_2 = gamma.reshape(1, d_hid_p)
    be_2 = beta.reshape(1, d_hid_p)
    b2_2 = b2.reshape(1, d_out_p)

    # --- adaptive row tile (MXU M dim): multiple of 8, capped by row count ----
    rt = min(int(row_tile), _round_up(rows, 8))
    rt = max(8, (rt // 8) * 8)
    # For moderately large inputs that would otherwise produce a single grid
    # step, expose >= 2 steps so megacore parts can shard the row axis; keep a
    # single step for tiny inputs (per-step overhead dominates there).
    if rows >= 128 and pl.cdiv(rows, rt) < 2:
        rt = max(8, _round_up(pl.cdiv(rows, 2), 8))
    grid = (pl.cdiv(rows, rt),)   # ragged last tile handled by Pallas clipping

    kernel = functools.partial(
        _mlp_kernel, normalize=normalize, ln_eps=1e-5, l2_eps=1e-12,
        inv_hidden=1.0 / float(d_hid))

    itemsize = jnp.dtype(x.dtype).itemsize
    w_itemsize = jnp.dtype(w1.dtype).itemsize
    cost = pl.CostEstimate(
        flops=int(2 * rows * (d_in * d_hid_p + d_hid_p * d_out_p)),
        transcendentals=int(rows * (d_hid_p + 2 * d_out_p)),
        bytes_accessed=int(rows * (d_in + d_out_p) * itemsize
                           + (d_in * d_hid_p + d_hid_p * d_out_p) * w_itemsize),
    )

    out = pl.pallas_call(
        kernel,
        out_shape=jax.ShapeDtypeStruct((rows, d_out_p), x.dtype),
        grid_spec=pltpu.PrefetchScalarGridSpec(
            num_scalar_prefetch=0,
            grid=grid,
            in_specs=[
                pl.BlockSpec((rt, d_in), lambda i: (i, 0)),          # x tile
                pl.BlockSpec((d_in, d_hid_p), lambda i: (0, 0)),     # W1 (resident)
                pl.BlockSpec((1, d_hid_p), lambda i: (0, 0)),        # b1
                pl.BlockSpec((1, d_hid_p), lambda i: (0, 0)),        # LN gamma
                pl.BlockSpec((1, d_hid_p), lambda i: (0, 0)),        # LN beta
                pl.BlockSpec((d_hid_p, d_out_p), lambda i: (0, 0)),  # W2 (resident)
                pl.BlockSpec((1, d_out_p), lambda i: (0, 0)),        # b2
            ],
            out_specs=pl.BlockSpec((rt, d_out_p), lambda i: (i, 0)),
        ),
        compiler_params=pltpu.CompilerParams(
            dimension_semantics=("parallel",)),
        cost_estimate=cost,
    )(x2, w1, b1_2, g_2, be_2, w2, b2_2)

    out = out[:, :d_out]
    return out.reshape(*lead, d_out)


def mlp_reference(x, params, *, normalize=False):
    """Pure-JAX reference matching the PyTorch module."""
    w1, b1, gamma, beta, w2, b2 = params
    h = x @ w1 + b1
    h = _gelu_exact(h)
    mu = jnp.mean(h, axis=-1, keepdims=True)
    var = jnp.mean(jnp.square(h - mu), axis=-1, keepdims=True)
    h = (h - mu) * lax.rsqrt(var + 1e-5) * gamma + beta
    y = h @ w2 + b2
    y = _gelu_exact(y)
    if normalize:
        nrm = jnp.sqrt(jnp.sum(y * y, axis=-1, keepdims=True))
        y = y / jnp.maximum(nrm, 1e-12)
    return y


def init_params(key, input_dim, hidden_dim, out_dim, dtype=jnp.float32):
    k1, k2, k3, k4 = jax.random.split(key, 4)
    # Kaiming-uniform-ish deterministic init (bound = 1/sqrt(fan_in))
    lim1 = 1.0 / np.sqrt(input_dim)
    lim2 = 1.0 / np.sqrt(hidden_dim)
    w1 = jax.random.uniform(k1, (input_dim, hidden_dim), dtype, -lim1, lim1)
    b1 = jax.random.uniform(k2, (hidden_dim,), dtype, -lim1, lim1)
    gamma = jnp.ones((hidden_dim,), dtype)   # nn.LayerNorm default affine init
    beta = jnp.zeros((hidden_dim,), dtype)
    w2 = jax.random.uniform(k3, (hidden_dim, out_dim), dtype, -lim2, lim2)
    b2 = jax.random.uniform(k4, (out_dim,), dtype, -lim2, lim2)
    return (w1, b1, gamma, beta, w2, b2)


if __name__ == "__main__":
    input_dim, hidden_dim, out_dim = 32, 64, 16

    key = jax.random.PRNGKey(0)
    kx, kp = jax.random.split(key)
    x = jax.random.normal(kx, (2, 8, input_dim), jnp.float32)  # (batch, seq, d_in)
    params = init_params(kp, input_dim, hidden_dim, out_dim)

    # normalize=True path (L2NormalizationLayer tail)
    out = mlp_pallas(x, params, normalize=True)
    out = jax.block_until_ready(out)
    ref = mlp_reference(x, params, normalize=True)
    np.testing.assert_allclose(np.asarray(out), np.asarray(ref),
                               rtol=1e-4, atol=2e-5)
    assert out.shape == (2, 8, out_dim)

    # normalize=False path (nn.Identity tail)
    out2 = mlp_pallas(x, params, normalize=False)
    out2 = jax.block_until_ready(out2)
    ref2 = mlp_reference(x, params, normalize=False)
    np.testing.assert_allclose(np.asarray(out2), np.asarray(ref2),
                               rtol=1e-4, atol=2e-5)

    print("KERNEL_OK")
</pallas_src>

<mosaic_0001>
module attributes {stable_mosaic.version = 11 : i64} {
  func.func @_mlp_kernel(%arg0: i32, %arg1: memref<16x32xf32, #tpu.memory_space<vmem>>, %arg2: memref<32x128xf32, #tpu.memory_space<vmem>>, %arg3: memref<1x128xf32, #tpu.memory_space<vmem>>, %arg4: memref<1x128xf32, #tpu.memory_space<vmem>>, %arg5: memref<1x128xf32, #tpu.memory_space<vmem>>, %arg6: memref<128x128xf32, #tpu.memory_space<vmem>>, %arg7: memref<1x128xf32, #tpu.memory_space<vmem>>, %arg8: memref<16x128xf32, #tpu.memory_space<vmem>>) attributes {dimension_semantics = [#tpu.dimension_semantics<parallel>], iteration_bounds = array<i64: 1>, scalar_prefetch = 0 : i64, scratch_operands = 0 : i64, tpu.core_type = #tpu.core_type<tc>, window_params = [{transform_indices = @transform_0, window_bounds = array<i64: 16, 32>}, {pipeline_mode = #tpu.pipeline_mode<synchronous>, transform_indices = @transform_1, window_bounds = array<i64: 32, 128>}, {pipeline_mode = #tpu.pipeline_mode<synchronous>, transform_indices = @transform_2, window_bounds = array<i64: 1, 128>}, {pipeline_mode = #tpu.pipeline_mode<synchronous>, transform_indices = @transform_3, window_bounds = array<i64: 1, 128>}, {pipeline_mode = #tpu.pipeline_mode<synchronous>, transform_indices = @transform_4, window_bounds = array<i64: 1, 128>}, {pipeline_mode = #tpu.pipeline_mode<synchronous>, transform_indices = @transform_5, window_bounds = array<i64: 128, 128>}, {pipeline_mode = #tpu.pipeline_mode<synchronous>, transform_indices = @transform_6, window_bounds = array<i64: 1, 128>}, {transform_indices = @transform_7, window_bounds = array<i64: 16, 128>}]} {
    %c0 = arith.constant 0 : index
    %c0_0 = arith.constant 0 : index
    %0 = vector.load %arg1[%c0, %c0_0] : memref<16x32xf32, #tpu.memory_space<vmem>>, vector<16x32xf32>
    %c0_1 = arith.constant 0 : index
    %c0_2 = arith.constant 0 : index
    %1 = vector.load %arg2[%c0_1, %c0_2] : memref<32x128xf32, #tpu.memory_space<vmem>>, vector<32x128xf32>
    %cst = arith.constant dense<0.000000e+00> : vector<16x128xf32>
    %2 = tpu.matmul %0, %1, %cst {dimension_numbers = #tpu.dot_dimension_numbers<[1], [0], [0], [1], [0, 0, 1, 1], [], []>} : vector<16x32xf32>, vector<32x128xf32>, vector<16x128xf32> -> vector<16x128xf32>
    %c0_3 = arith.constant 0 : index
    %c0_4 = arith.constant 0 : index
    %3 = vector.load %arg3[%c0_3, %c0_4] : memref<1x128xf32, #tpu.memory_space<vmem>>, vector<1x128xf32>
    %4 = vector.broadcast %3 : vector<1x128xf32> to vector<16x128xf32>
    %5 = arith.addf %2, %4 : vector<16x128xf32>
    %cst_5 = arith.constant 5.000000e-01 : f32
    %6 = vector.broadcast %cst_5 : f32 to vector<16x128xf32>
    %7 = arith.mulf %6, %5 : vector<16x128xf32>
    %cst_6 = arith.constant 0.707106769 : f32
    %8 = vector.broadcast %cst_6 : f32 to vector<16x128xf32>
    %9 = arith.mulf %5, %8 : vector<16x128xf32>
    %10 = math.erf %9 : vector<16x128xf32>
    %cst_7 = arith.constant 1.000000e+00 : f32
    %11 = vector.broadcast %cst_7 : f32 to vector<16x128xf32>
    %12 = arith.addf %11, %10 : vector<16x128xf32>
    %13 = arith.mulf %7, %12 : vector<16x128xf32>
    %cst_8 = arith.constant dense<0.000000e+00> : vector<16xf32>
    %14 = vector.multi_reduction <add>, %13, %cst_8 [1] : vector<16x128xf32> to vector<16xf32>
    %15 = vector.shape_cast %14 : vector<16xf32> to vector<16x1xf32>
    %16 = arith.mulf %13, %13 : vector<16x128xf32>
    %cst_9 = arith.constant dense<0.000000e+00> : vector<16xf32>
    %17 = vector.multi_reduction <add>, %16, %cst_9 [1] : vector<16x128xf32> to vector<16xf32>
    %18 = vector.shape_cast %17 : vector<16xf32> to vector<16x1xf32>
    %cst_10 = arith.constant 1.562500e-02 : f32
    %19 = vector.broadcast %cst_10 : f32 to vector<16x1xf32>
    %20 = arith.mulf %15, %19 : vector<16x1xf32>
    %cst_11 = arith.constant 1.562500e-02 : f32
    %21 = vector.broadcast %cst_11 : f32 to vector<16x1xf32>
    %22 = arith.mulf %18, %21 : vector<16x1xf32>
    %23 = arith.mulf %20, %20 : vector<16x1xf32>
    %24 = arith.subf %22, %23 : vector<16x1xf32>
    %25 = vector.broadcast %20 : vector<16x1xf32> to vector<16x128xf32>
    %26 = arith.subf %13, %25 : vector<16x128xf32>
    %cst_12 = arith.constant 9.99999974E-6 : f32
    %27 = vector.broadcast %cst_12 : f32 to vector<16x1xf32>
    %28 = arith.addf %24, %27 : vector<16x1xf32>
    %29 = math.rsqrt %28 : vector<16x1xf32>
    %30 = vector.broadcast %29 : vector<16x1xf32> to vector<16x128xf32>
    %31 = arith.mulf %26, %30 : vector<16x128xf32>
    %c0_13 = arith.constant 0 : index
    %c0_14 = arith.constant 0 : index
    %32 = vector.load %arg4[%c0_13, %c0_14] : memref<1x128xf32, #tpu.memory_space<vmem>>, vector<1x128xf32>
    %33 = vector.broadcast %32 : vector<1x128xf32> to vector<16x128xf32>
    %34 = arith.mulf %31, %33 : vector<16x128xf32>
    %c0_15 = arith.constant 0 : index
    %c0_16 = arith.constant 0 : index
    %35 = vector.load %arg5[%c0_15, %c0_16] : memref<1x128xf32, #tpu.memory_space<vmem>>, vector<1x128xf32>
    %36 = vector.broadcast %35 : vector<1x128xf32> to vector<16x128xf32>
    %37 = arith.addf %34, %36 : vector<16x128xf32>
    %c0_17 = arith.constant 0 : index
    %c0_18 = arith.constant 0 : index
    %38 = vector.load %arg6[%c0_17, %c0_18] : memref<128x128xf32, #tpu.memory_space<vmem>>, vector<128x128xf32>
    %cst_19 = arith.constant dense<0.000000e+00> : vector<16x128xf32>
    %39 = tpu.matmul %37, %38, %cst_19 {dimension_numbers = #tpu.dot_dimension_numbers<[1], [0], [0], [1], [0, 0, 1, 1], [], []>} : vector<16x128xf32>, vector<128x128xf32>, vector<16x128xf32> -> vector<16x128xf32>
    %c0_20 = arith.constant 0 : index
    %c0_21 = arith.constant 0 : index
    %40 = vector.load %arg7[%c0_20, %c0_21] : memref<1x128xf32, #tpu.memory_space<vmem>>, vector<1x128xf32>
    %41 = vector.broadcast %40 : vector<1x128xf32> to vector<16x128xf32>
    %42 = arith.addf %39, %41 : vector<16x128xf32>
    %cst_22 = arith.constant 5.000000e-01 : f32
    %43 = vector.broadcast %cst_22 : f32 to vector<16x128xf32>
    %44 = arith.mulf %43, %42 : vector<16x128xf32>
    %cst_23 = arith.constant 0.707106769 : f32
    %45 = vector.broadcast %cst_23 : f32 to vector<16x128xf32>
    %46 = arith.mulf %42, %45 : vector<16x128xf32>
    %47 = math.erf %46 : vector<16x128xf32>
    %cst_24 = arith.constant 1.000000e+00 : f32
    %48 = vector.broadcast %cst_24 : f32 to vector<16x128xf32>
    %49 = arith.addf %48, %47 : vector<16x128xf32>
    %50 = arith.mulf %44, %49 : vector<16x128xf32>
    %51 = arith.mulf %50, %50 : vector<16x128xf32>
    %cst_25 = arith.constant dense<0.000000e+00> : vector<16xf32>
    %52 = vector.multi_reduction <add>, %51, %cst_25 [1] : vector<16x128xf32> to vector<16xf32>
    %53 = vector.shape_cast %52 : vector<16xf32> to vector<16x1xf32>
    %cst_26 = arith.constant 1.000000e-24 : f32
    %54 = vector.broadcast %cst_26 : f32 to vector<16x1xf32>
    %55 = arith.maximumf %53, %54 : vector<16x1xf32>
    %56 = math.rsqrt %55 : vector<16x1xf32>
    %57 = vector.broadcast %56 : vector<16x1xf32> to vector<16x128xf32>
    %58 = arith.mulf %50, %57 : vector<16x128xf32>
    %c0_27 = arith.constant 0 : index
    %c0_28 = arith.constant 0 : index
    %59 = vector.load %arg8[%c0_27, %c0_28] : memref<16x128xf32, #tpu.memory_space<vmem>>, vector<16x128xf32>
    tpu.vector_store %arg8[%c0_27, %c0_28], %58 {strides = array<i32>} : memref<16x128xf32, #tpu.memory_space<vmem>>, vector<16x128xf32>,
    return
  }
  func.func @transform_0(%arg0: i32) -> (i32, i32) {
    %c0_i32 = arith.constant 0 : i32
    %c0_i32_0 = arith.constant 0 : i32
    return %arg0, %c0_i32 : i32, i32
  }
  func.func @transform_1(%arg0: i32) -> (i32, i32) {
    %c0_i32 = arith.constant 0 : i32
    %c0_i32_0 = arith.constant 0 : i32
    %c0_i32_1 = arith.constant 0 : i32
    return %c0_i32, %c0_i32_0 : i32, i32
  }
  func.func @transform_2(%arg0: i32) -> (i32, i32) {
    %c0_i32 = arith.constant 0 : i32
    %c0_i32_0 = arith.constant 0 : i32
    %c0_i32_1 = arith.constant 0 : i32
    return %c0_i32, %c0_i32_0 : i32, i32
  }
  func.func @transform_3(%arg0: i32) -> (i32, i32) {
    %c0_i32 = arith.constant 0 : i32
    %c0_i32_0 = arith.constant 0 : i32
    %c0_i32_1 = arith.constant 0 : i32
    return %c0_i32, %c0_i32_0 : i32, i32
  }
  func.func @transform_4(%arg0: i32) -> (i32, i32) {
    %c0_i32 = arith.constant 0 : i32
    %c0_i32_0 = arith.constant 0 : i32
    %c0_i32_1 = arith.constant 0 : i32
    return %c0_i32, %c0_i32_0 : i32, i32
  }
  func.func @transform_5(%arg0: i32) -> (i32, i32) {
    %c0_i32 = arith.constant 0 : i32
    %c0_i32_0 = arith.constant 0 : i32
    %c0_i32_1 = arith.constant 0 : i32
    return %c0_i32, %c0_i32_0 : i32, i32
  }
  func.func @transform_6(%arg0: i32) -> (i32, i32) {
    %c0_i32 = arith.constant 0 : i32
    %c0_i32_0 = arith.constant 0 : i32
    %c0_i32_1 = arith.constant 0 : i32
    return %c0_i32, %c0_i32_0 : i32, i32
  }
  func.func @transform_7(%arg0: i32) -> (i32, i32) {
    %c0_i32 = arith.constant 0 : i32
    %c0_i32_0 = arith.constant 0 : i32
    return %arg0, %c0_i32 : i32, i32
  }
}

</mosaic_0001>

<llo_original>
// kernel: tpu_custom_call.1
$region0: #{tpu_custom_call.1}
  #allocation0 [shape = 'u32[]', space=smem, size = 0x4, offset = 0x4, fixed_abs, tag = 'smem constant byte address 0x4 - core index']
  #allocation1 [shape = 'u32[72,128]{1,0:T(1,128)}', space=vmem, size = 0x9000, scoped, tag = 'internal scratch']
  %s0 = inlined_call_operand.hbm [shape: f32[16,32], index: 0, kind: input, shape index: {}]
  %s1 = inlined_call_operand.hbm [shape: f32[32,128], index: 1, kind: input, shape index: {}]
  %s2 = inlined_call_operand.vmem [shape: f32[1,128], index: 2, kind: input, shape index: {}]
  %s3 = inlined_call_operand.vmem [shape: f32[1,128], index: 3, kind: input, shape index: {}]
  %s4 = inlined_call_operand.vmem [shape: f32[1,128], index: 4, kind: input, shape index: {}]
  %s5 = inlined_call_operand.hbm [shape: f32[128,128], index: 5, kind: input, shape index: {}]
  %s6 = inlined_call_operand.vmem [shape: f32[1,128], index: 6, kind: input, shape index: {}]
  %s7 = inlined_call_operand.hbm [shape: f32[16,128], index: 7, kind: output, shape index: {}]
  %s8 = sld [smem:[#allocation0]]
  $region50: #{tpu_custom_call.1} parent=0
    _
  %s10 = ssub.s32 1, %s8
  %s11 = scalar_select 0, %s10, %s8
  $region1: #{tpu_custom_call.1} parent=0
    #allocation2 [shape = 'u8[8192]{0}', space=vmem, size = 0x2000, scoped, tag = 'input window, operand 0, single buffered']
    #allocation3 [shape = 's32[1]{0}', space=sflag, size = 0x4, scoped, tag = 'scoped memory for tpu_custom_call.1']
    #allocation4 [shape = 's32[1]{0}', space=sflag, size = 0x4, scoped, tag = 'scoped memory for tpu_custom_call.1']
    #allocation5 [shape = 'u8[16384]{0}', space=vmem, size = 0x4000, scoped, tag = 'input window, operand 1, single buffered']
    #allocation6 [shape = 's32[1]{0}', space=sflag, size = 0x4, scoped, tag = 'scoped memory for tpu_custom_call.1']
    #allocation7 [shape = 'u8[65536]{0}', space=vmem, size = 0x10000, scoped, tag = 'input window, operand 5, single buffered']
    #allocation8 [shape = 'u8[8192]{0}', space=vmem, size = 0x2000, scoped, tag = 'output window, operand 0, single buffered']
    %12 = vsyncpa [#allocation3], 0
    %13 = vsyncpa [#allocation6], 0
    %14 = vsyncpa [#allocation4], 0
    // Predicated region
    $region2: #{tpu_custom_call.1} parent=1 // pred_check
      _
    $region3: #{tpu_custom_call.1} parent=1 // pred_check_branch
      %16 = sbr.rel (0) target = $region5
    $region4: #{tpu_custom_call.1} parent=1 // pred_region
      %18 = vsyncadd [#allocation3], 0
      %s19 = sshll.u32 %s0, 4
      %s20 = int_to_ptr.hbm [resolvable:$true] %s19
      %s21 = sshll.u32 [#allocation2], 4
      %s22 = int_to_ptr.vmem [resolvable:$true] %s21
      %27 = dma.hbm_to_vmem [thread:$0]  %s20, 256, %s22, [#allocation3], 128, 128, 8
    $region5: #{tpu_custom_call.1} parent=1 // pred_fallthru
      _
    // Predicated region
    $region6: #{tpu_custom_call.1} parent=1 // pred_check
      _
    $region7: #{tpu_custom_call.1} parent=1 // pred_check_branch
      %29 = sbr.rel (0) target = $region9
    $region8: #{tpu_custom_call.1} parent=1 // pred_region
      %31 = vsyncadd [#allocation6], 0
      %s32 = sshll.u32 %s1, 4
      %s33 = int_to_ptr.hbm [resolvable:$true] %s32
      %s34 = sshll.u32 [#allocation5], 4
      %s35 = int_to_ptr.vmem [resolvable:$true] %s34
      %40 = dma.hbm_to_vmem [thread:$0]  %s33, 512, %s35, [#allocation6], 128, 128, 8
    $region9: #{tpu_custom_call.1} parent=1 // pred_fallthru
      _
    // Predicated region
    $region10: #{tpu_custom_call.1} parent=1 // pred_check
      _
    $region11: #{tpu_custom_call.1} parent=1 // pred_check_branch
      %42 = sbr.rel (0) target = $region13
    $region12: #{tpu_custom_call.1} parent=1 // pred_region
      _
    $region13: #{tpu_custom_call.1} parent=1 // pred_fallthru
      _
    // Predicated region
    $region14: #{tpu_custom_call.1} parent=1 // pred_check
      _
    $region15: #{tpu_custom_call.1} parent=1 // pred_check_branch
      %44 = sbr.rel (0) target = $region17
    $region16: #{tpu_custom_call.1} parent=1 // pred_region
      _
    $region17: #{tpu_custom_call.1} parent=1 // pred_fallthru
      _
    // Predicated region
    $region18: #{tpu_custom_call.1} parent=1 // pred_check
      _
    $region19: #{tpu_custom_call.1} parent=1 // pred_check_branch
      %46 = sbr.rel (0) target = $region21
    $region20: #{tpu_custom_call.1} parent=1 // pred_region
      _
    $region21: #{tpu_custom_call.1} parent=1 // pred_fallthru
      _
    // Predicated region
    $region22: #{tpu_custom_call.1} parent=1 // pred_check
      _
    $region23: #{tpu_custom_call.1} parent=1 // pred_check_branch
      %48 = sbr.rel (0) target = $region25
    $region24: #{tpu_custom_call.1} parent=1 // pred_region
      %50 = vsyncadd [#allocation6], 0
      %s51 = sshll.u32 %s5, 4
      %s52 = int_to_ptr.hbm [resolvable:$true] %s51
      %s53 = sshll.u32 [#allocation7], 4
      %s54 = int_to_ptr.vmem [resolvable:$true] %s53
      %59 = dma.hbm_to_vmem [thread:$0]  %s52, 2048, %s54, [#allocation6], 128, 128, 8
    $region25: #{tpu_custom_call.1} parent=1 // pred_fallthru
      _
    // Predicated region
    $region26: #{tpu_custom_call.1} parent=1 // pred_check
      _
    $region27: #{tpu_custom_call.1} parent=1 // pred_check_branch
      %61 = sbr.rel (0) target = $region29
    $region28: #{tpu_custom_call.1} parent=1 // pred_region
      _
    $region29: #{tpu_custom_call.1} parent=1 // pred_fallthru
      _
    // Predicated region
    $region30: #{tpu_custom_call.1} parent=1 // pred_check
      _
    $region31: #{tpu_custom_call.1} parent=1 // pred_check_branch
      %63 = sbr.rel (0) target = $region33
    $region32: #{tpu_custom_call.1} parent=1 // pred_region
      %65 = dma.done [#allocation3], 256
    $region33: #{tpu_custom_call.1} parent=1 // pred_fallthru
      _
    // Predicated region
    $region34: #{tpu_custom_call.1} parent=1 // pred_check
      _
    $region35: #{tpu_custom_call.1} parent=1 // pred_check_branch
      %67 = sbr.rel (0) target = $region37
    $region36: #{tpu_custom_call.1} parent=1 // pred_region
      %69 = dma.done [#allocation6], 512
    $region37: #{tpu_custom_call.1} parent=1 // pred_fallthru
      _
    // Predicated region
    $region38: #{tpu_custom_call.1} parent=1 // pred_check
      _
    $region39: #{tpu_custom_call.1} parent=1 // pred_check_branch
      %71 = sbr.rel (0) target = $region41
    $region40: #{tpu_custom_call.1} parent=1 // pred_region
      %73 = dma.done [#allocation6], 2048
    $region41: #{tpu_custom_call.1} parent=1 // pred_fallthru
      _
    %v74 = vld [vmem:[#allocation2] sm:$0xff]
    %v75 = vld [vmem:[#allocation2 + $0x8] sm:$0xff]
    %v76 = vld [vmem:[#allocation5] sm:$0xff]
    %v77 = vld [vmem:[#allocation5 + $0x8] sm:$0xff]
    %v78 = vld [vmem:[#allocation5 + $0x10] sm:$0xff]
    %v79 = vld [vmem:[#allocation5 + $0x18] sm:$0xff]
    %v80 = vld [vmem:[%s2] sm:$0x1]
    %v82 = vperm.slane %v80, 0
    %vm84 = vcmask 261120
    %v86 = vsel %vm84, %v74, 0
    %v89 = vsel %vm84, %v75, 0
    %91 = vmatpush.msra.mxu0 0.0
    %92 = vmatpush.msra.mxu0 0.0
    %93 = vmatpush.msra.mxu0 0.0
    %94 = vmatpush.msra.mxu0 0.0
    %95 = vmatpush.msra.mxu0 0.0
    %96 = vmatpush.msra.mxu0 0.0
    %97 = vmatpush.msra.mxu0 0.0
    %98 = vmatpush.msra.mxu0 0.0
    %99 = vmatpush.msra.mxu0 0.0
    %100 = vmatpush.msra.mxu0 0.0
    %101 = vmatpush.msra.mxu0 0.0
    %102 = vmatpush.msra.mxu0 0.0
    %103 = vmatpush.msra.mxu0 %v79
    %104 = vmatpush.msra.mxu0 %v78
    %105 = vmatpush.msra.mxu0 %v77
    %106 = vmatpush.msra.mxu0 %v76
    %107 = vmatmul.f32.gmra.mxu0 %v86
    %v108 = vpop.f32.mrf.mxu0
    %v109 = vadd.f32 %v82, %v108
    %110 = vmatmul.f32.gmra.mxu0 %v89
    %v111 = vpop.f32.mrf.mxu0
    %v112 = vadd.f32 %v82, %v111
    %113 = vdwg.mxu0
    %v114 = vmul.f32 %v109, 0.5
    %v115 = vmul.f32 %v112, 0.5
    %v116 = vmul.f32 %v109, 0.70710677
    %v117 = vmul.f32 %v112, 0.70710677
    %v118 = vmul.f32 %v116, %v116
    %v119 = vmin.f32 16.0, %v118
    %v120 = vmul.f32 %v119, 2.1237322e-06
    %v121 = vadd.f32 %v120, 0.00028619796
    %v122 = vmul.f32 %v119, %v121
    %v123 = vadd.f32 %v122, 0.0036580483
    %v124 = vmul.f32 %v119, %v123
    %v125 = vadd.f32 %v124, 0.05243302
    %v126 = vmul.f32 %v119, %v125
    %v127 = vadd.f32 %v126, 0.18741608
    %v128 = vmul.f32 %v119, %v127
    %v129 = vadd.f32 %v128, 1.1283791
    %v130 = vmul.f32 %v116, %v129
    %v131 = vmul.f32 %v119, 3.8918573e-05
    %v132 = vadd.f32 %v131, 0.001143296
    %v133 = vmul.f32 %v119, %v132
    %v134 = vadd.f32 %v133, 0.014752088
    %v135 = vmul.f32 %v119, %v134
    %v136 = vadd.f32 %v135, 0.112945676
    %v137 = vmul.f32 %v119, %v136
    %v138 = vadd.f32 %v137, 0.4994258
    %v139 = vmul.f32 %v119, %v138
    %v140 = vadd.f32 %v139, 1.0
    %v141 = vrcp.pop %v140
    %v142 = vmul.f32 %v140, %v141
    %v143 = vsub.f32 1.0, %v142
    %v144 = vmul.f32 %v141, %v143
    %v145 = vadd.f32 %v141, %v144
    %vm146 = vweird.f32 %v140
    %vm147 = vweird.f32 %v141
    %vm148 = vmor %vm146, %vm147
    %v149 = vsel %vm148, %v141, %v145
    %v150 = vand.u32 2147483647, %v140
    %vm151 = vcmp.eq.f32.partialorder %v150, 8.507059e+37
    %v152 = vand.u32 %v140, 2147483648
    %v153 = vor.u32 1.1754944e-38, %v152
    %v154 = vsel %vm151, %v153, %v149
    %v155 = vmul.f32 %v130, %v154
    %v156 = vmin.f32 %v155, 1.0
    %v157 = vmax.f32 %v156, -1.0
    %v158 = vmul.f32 %v117, %v117
    %v159 = vmin.f32 16.0, %v158
    %v160 = vmul.f32 %v159, 2.1237322e-06
    %v161 = vadd.f32 %v160, 0.00028619796
    %v162 = vmul.f32 %v159, %v161
    %v163 = vadd.f32 %v162, 0.0036580483
    %v164 = vmul.f32 %v159, %v163
    %v165 = vadd.f32 %v164, 0.05243302
    %v166 = vmul.f32 %v159, %v165
    %v167 = vadd.f32 %v166, 0.18741608
    %v168 = vmul.f32 %v159, %v167
    %v169 = vadd.f32 %v168, 1.1283791
    %v170 = vmul.f32 %v117, %v169
    %v171 = vmul.f32 %v159, 3.8918573e-05
    %v172 = vadd.f32 %v171, 0.001143296
    %v173 = vmul.f32 %v159, %v172
    %v174 = vadd.f32 %v173, 0.014752088
    %v175 = vmul.f32 %v159, %v174
    %v176 = vadd.f32 %v175, 0.112945676
    %v177 = vmul.f32 %v159, %v176
    %v178 = vadd.f32 %v177, 0.4994258
    %v179 = vmul.f32 %v159, %v178
    %v180 = vadd.f32 %v179, 1.0
    %v181 = vrcp.pop %v180
    %v182 = vmul.f32 %v180, %v181
    %v183 = vsub.f32 1.0, %v182
    %v184 = vmul.f32 %v181, %v183
    %v185 = vadd.f32 %v181, %v184
    %vm186 = vweird.f32 %v180
    %vm187 = vweird.f32 %v181
    %vm188 = vmor %vm186, %vm187
    %v189 = vsel %vm188, %v181, %v185
    %v190 = vand.u32 2147483647, %v180
    %vm191 = vcmp.eq.f32.partialorder %v190, 8.507059e+37
    %v192 = vand.u32 %v180, 2147483648
    %v193 = vor.u32 1.1754944e-38, %v192
    %v194 = vsel %vm191, %v193, %v189
    %v195 = vmul.f32 %v170, %v194
    %v196 = vmin.f32 %v195, 1.0
    %v197 = vmax.f32 %v196, -1.0
    %v198 = vadd.f32 %v157, 1.0
    %v199 = vadd.f32 %v197, 1.0
    %v200 = vmul.f32 %v114, %v198
    %v201 = vmul.f32 %v115, %v199
    %202 = vadd.xlane.f32.xlu0 %v200
    %v203 = vpop.xlane.xlu0 %202
    %204 = vadd.xlane.f32.xlu0 %v201
    %v205 = vpop.xlane.xlu0 %204
    %v206 = vmul.f32 %v200, %v200
    %v207 = vmul.f32 %v201, %v201
    %208 = vadd.xlane.f32.xlu0 %v206
    %v209 = vpop.xlane.xlu0 %208
    %210 = vadd.xlane.f32.xlu0 %v207
    %v211 = vpop.xlane.xlu0 %210
    %v212 = vmul.f32 %v203, 0.015625
    %v213 = vmul.f32 %v205, 0.015625
    %v214 = vmul.f32 %v209, 0.015625
    %v215 = vmul.f32 %v211, 0.015625
    %v216 = vmul.f32 %v212, %v212
    %v217 = vmul.f32 %v213, %v213
    %v218 = vsub.f32 %v214, %v216
    %v219 = vsub.f32 %v215, %v217
    %v220 = vsub.f32 %v200, %v212
    %v221 = vsub.f32 %v201, %v213
    %v222 = vadd.f32 %v218, 1e-05
    %v223 = vadd.f32 %v219, 1e-05
    %v224 = vrsqrt.pop %v222
    %v225 = vmul.f32 %v224, %v222
    %v226 = vmul.f32 %v225, %v224
    %v227 = vmul.f32 0.5, %v226
    %v228 = vsub.f32 1.5, %v227
    %v229 = vmul.f32 %v224, %v228
    %vm230 = vweird.f32 %v222
    %vm231 = vweird.f32 %v224
    %vm232 = vmor %vm230, %vm231
    %v233 = vsel %vm232, %v224, %v229
    %v234 = vrsqrt.pop %v223
    %v235 = vmul.f32 %v234, %v223
    %v236 = vmul.f32 %v235, %v234
    %v237 = vmul.f32 0.5, %v236
    %v238 = vsub.f32 1.5, %v237
    %v239 = vmul.f32 %v234, %v238
    %vm240 = vweird.f32 %v223
    %vm241 = vweird.f32 %v234
    %vm242 = vmor %vm240, %vm241
    %v243 = vsel %vm242, %v234, %v239
    %v244 = vmul.f32 %v220, %v233
    %v245 = vmul.f32 %v221, %v243
    %v246 = vld [vmem:[%s3] sm:$0x1]
    %v248 = vperm.slane %v246, 0
    %v250 = vmul.f32 %v244, %v248
    %v251 = vmul.f32 %v245, %v248
    %v252 = vld [vmem:[%s4] sm:$0x1]
    %v254 = vperm.slane %v252, 0
    %v256 = vadd.f32 %v250, %v254
    %v257 = vadd.f32 %v251, %v254
    %v258 = vld [vmem:[#allocation7] sm:$0xff]
    %v259 = vld [vmem:[#allocation7 + $0x8] sm:$0xff]
    %v260 = vld [vmem:[#allocation7 + $0x10] sm:$0xff]
    %v261 = vld [vmem:[#allocation7 + $0x18] sm:$0xff]
    %v262 = vld [vmem:[#allocation7 + $0x20] sm:$0xff]
    %v263 = vld [vmem:[#allocation7 + $0x28] sm:$0xff]
    %v264 = vld [vmem:[#allocation7 + $0x30] sm:$0xff]
    %v265 = vld [vmem:[#allocation7 + $0x38] sm:$0xff]
    %v266 = vld [vmem:[#allocation7 + $0x40] sm:$0xff]
    %v267 = vld [vmem:[#allocation7 + $0x48] sm:$0xff]
    %v268 = vld [vmem:[#allocation7 + $0x50] sm:$0xff]
    %v269 = vld [vmem:[#allocation7 + $0x58] sm:$0xff]
    %v270 = vld [vmem:[#allocation7 + $0x60] sm:$0xff]
    %v271 = vld [vmem:[#allocation7 + $0x68] sm:$0xff]
    %v272 = vld [vmem:[#allocation7 + $0x70] sm:$0xff]
    %v273 = vld [vmem:[#allocation7 + $0x78] sm:$0xff]
    %v274 = vld [vmem:[%s6] sm:$0x1]
    %v276 = vperm.slane %v274, 0
    %278 = vmatpush.msra.mxu0 %v273
    %279 = vmatpush.msra.mxu0 %v272
    %280 = vmatpush.msra.mxu0 %v271
    %281 = vmatpush.msra.mxu0 %v270
    %282 = vmatpush.msra.mxu0 %v269
    %283 = vmatpush.msra.mxu0 %v268
    %284 = vmatpush.msra.mxu0 %v267
    %285 = vmatpush.msra.mxu0 %v266
    %286 = vmatpush.msra.mxu0 %v265
    %287 = vmatpush.msra.mxu0 %v264
    %288 = vmatpush.msra.mxu0 %v263
    %289 = vmatpush.msra.mxu0 %v262
    %290 = vmatpush.msra.mxu0 %v261
    %291 = vmatpush.msra.mxu0 %v260
    %292 = vmatpush.msra.mxu0 %v259
    %293 = vmatpush.msra.mxu0 %v258
    %294 = vmatmul.f32.gmra.mxu0 %v256
    %v295 = vpop.f32.mrf.mxu0
    %v296 = vadd.f32 %v276, %v295
    %297 = vmatmul.f32.gmra.mxu0 %v257
    %v298 = vpop.f32.mrf.mxu0
    %v299 = vadd.f32 %v276, %v298
    %300 = vdwg.mxu0
    %v301 = vmul.f32 %v296, 0.5
    %v302 = vmul.f32 %v299, 0.5
    %v303 = vmul.f32 %v296, 0.70710677
    %v304 = vmul.f32 %v299, 0.70710677
    %v305 = vmul.f32 %v303, %v303
    %v306 = vmin.f32 16.0, %v305
    %v307 = vmul.f32 %v306, 2.1237322e-06
    %v308 = vadd.f32 %v307, 0.00028619796
    %v309 = vmul.f32 %v306, %v308
    %v310 = vadd.f32 %v309, 0.0036580483
    %v311 = vmul.f32 %v306, %v310
    %v312 = vadd.f32 %v311, 0.05243302
    %v313 = vmul.f32 %v306, %v312
    %v314 = vadd.f32 %v313, 0.18741608
    %v315 = vmul.f32 %v306, %v314
    %v316 = vadd.f32 %v315, 1.1283791
    %v317 = vmul.f32 %v303, %v316
    %v318 = vmul.f32 %v306, 3.8918573e-05
    %v319 = vadd.f32 %v318, 0.001143296
    %v320 = vmul.f32 %v306, %v319
    %v321 = vadd.f32 %v320, 0.014752088
    %v322 = vmul.f32 %v306, %v321
    %v323 = vadd.f32 %v322, 0.112945676
    %v324 = vmul.f32 %v306, %v323
    %v325 = vadd.f32 %v324, 0.4994258
    %v326 = vmul.f32 %v306, %v325
    %v327 = vadd.f32 %v326, 1.0
    %v328 = vrcp.pop %v327
    %v329 = vmul.f32 %v327, %v328
    %v330 = vsub.f32 1.0, %v329
    %v331 = vmul.f32 %v328, %v330
    %v332 = vadd.f32 %v328, %v331
    %vm333 = vweird.f32 %v327
    %vm334 = vweird.f32 %v328
    %vm335 = vmor %vm333, %vm334
    %v336 = vsel %vm335, %v328, %v332
    %v337 = vand.u32 2147483647, %v327
    %vm338 = vcmp.eq.f32.partialorder %v337, 8.507059e+37
    %v339 = vand.u32 %v327, 2147483648
    %v340 = vor.u32 1.1754944e-38, %v339
    %v341 = vsel %vm338, %v340, %v336
    %v342 = vmul.f32 %v317, %v341
    %v343 = vmin.f32 %v342, 1.0
    %v344 = vmax.f32 %v343, -1.0
    %v345 = vmul.f32 %v304, %v304
    %v346 = vmin.f32 16.0, %v345
    %v347 = vmul.f32 %v346, 2.1237322e-06
    %v348 = vadd.f32 %v347, 0.00028619796
    %v349 = vmul.f32 %v346, %v348
    %v350 = vadd.f32 %v349, 0.0036580483
    %v351 = vmul.f32 %v346, %v350
    %v352 = vadd.f32 %v351, 0.05243302
    %v353 = vmul.f32 %v346, %v352
    %v354 = vadd.f32 %v353, 0.18741608
    %v355 = vmul.f32 %v346, %v354
    %v356 = vadd.f32 %v355, 1.1283791
    %v357 = vmul.f32 %v304, %v356
    %v358 = vmul.f32 %v346, 3.8918573e-05
    %v359 = vadd.f32 %v358, 0.001143296
    %v360 = vmul.f32 %v346, %v359
    %v361 = vadd.f32 %v360, 0.014752088
    %v362 = vmul.f32 %v346, %v361
    %v363 = vadd.f32 %v362, 0.112945676
    %v364 = vmul.f32 %v346, %v363
    %v365 = vadd.f32 %v364, 0.4994258
    %v366 = vmul.f32 %v346, %v365
    %v367 = vadd.f32 %v366, 1.0
    %v368 = vrcp.pop %v367
    %v369 = vmul.f32 %v367, %v368
    %v370 = vsub.f32 1.0, %v369
    %v371 = vmul.f32 %v368, %v370
    %v372 = vadd.f32 %v368, %v371
    %vm373 = vweird.f32 %v367
    %vm374 = vweird.f32 %v368
    %vm375 = vmor %vm373, %vm374
    %v376 = vsel %vm375, %v368, %v372
    %v377 = vand.u32 2147483647, %v367
    %vm378 = vcmp.eq.f32.partialorder %v377, 8.507059e+37
    %v379 = vand.u32 %v367, 2147483648
    %v380 = vor.u32 1.1754944e-38, %v379
    %v381 = vsel %vm378, %v380, %v376
    %v382 = vmul.f32 %v357, %v381
    %v383 = vmin.f32 %v382, 1.0
    %v384 = vmax.f32 %v383, -1.0
    %v385 = vadd.f32 %v344, 1.0
    %v386 = vadd.f32 %v384, 1.0
    %v387 = vmul.f32 %v301, %v385
    %v388 = vmul.f32 %v302, %v386
    %v389 = vmul.f32 %v387, %v387
    %v390 = vmul.f32 %v388, %v388
    %391 = vadd.xlane.f32.xlu0 %v389
    %v392 = vpop.xlane.xlu0 %391
    %393 = vadd.xlane.f32.xlu0 %v390
    %v394 = vpop.xlane.xlu0 %393
    %v395 = vmax.f32 %v392, 1e-24
    %v396 = vmax.f32 %v394, 1e-24
    %v397 = vrsqrt.pop %v395
    %v398 = vmul.f32 %v397, %v395
    %v399 = vmul.f32 %v398, %v397
    %v400 = vmul.f32 0.5, %v399
    %v401 = vsub.f32 1.5, %v400
    %v402 = vmul.f32 %v397, %v401
    %vm403 = vweird.f32 %v395
    %vm404 = vweird.f32 %v397
    %vm405 = vmor %vm403, %vm404
    %v406 = vsel %vm405, %v397, %v402
    %v407 = vrsqrt.pop %v396
    %v408 = vmul.f32 %v407, %v396
    %v409 = vmul.f32 %v408, %v407
    %v410 = vmul.f32 0.5, %v409
    %v411 = vsub.f32 1.5, %v410
    %v412 = vmul.f32 %v407, %v411
    %vm413 = vweird.f32 %v396
    %vm414 = vweird.f32 %v407
    %vm415 = vmor %vm413, %vm414
    %v416 = vsel %vm415, %v407, %v412
    %v417 = vmul.f32 %v387, %v406
    %v418 = vmul.f32 %v388, %v416
    %419 = vst [vmem:[#allocation8] sm:$0xff] %v417
    %420 = vst [vmem:[#allocation8 + $0x8] sm:$0xff] %v418
    // Predicated region
    $region42: #{tpu_custom_call.1} parent=1 // pred_check
      _
    $region43: #{tpu_custom_call.1} parent=1 // pred_check_branch
      %422 = sbr.rel (0) target = $region45
    $region44: #{tpu_custom_call.1} parent=1 // pred_region
      %424 = vsyncadd [#allocation4], 0
      %s425 = sshll.u32 [#allocation8], 4
      %s426 = int_to_ptr.vmem [resolvable:$true] %s425
      %s427 = sshll.u32 %s7, 4
      %s428 = int_to_ptr.hbm [resolvable:$true] %s427
      %433 = dma.vmem_to_hbm [thread:$0]  %s426, 256, %s428, [#allocation4], 128, 128, 8
    $region45: #{tpu_custom_call.1} parent=1 // pred_fallthru
      _
    // Predicated region
    $region46: #{tpu_custom_call.1} parent=1 // pred_check
      _
    $region47: #{tpu_custom_call.1} parent=1 // pred_check_branch
      %435 = sbr.rel (0) target = $region49
    $region48: #{tpu_custom_call.1} parent=1 // pred_region
      %437 = dma.done [#allocation4], 256
    $region49: #{tpu_custom_call.1} parent=1 // pred_fallthru
      _
    %438 = vsyncpa [#allocation3], 1
    %439 = vsyncpa [#allocation6], 1
    %440 = vsyncpa [#allocation4], 1

</llo_original>
